<compile_context>
chip_gen: v7x
topology: tpu7x:2x2x1
jax: 0.10.0
libtpu: 0.0.40
codegen_flags: <defaults>
</compile_context>

<pallas_src>
import functools
import math

import jax
import jax.numpy as jnp
import numpy as np
from jax.experimental import pallas as pl
from jax.experimental.pallas import tpu as pltpu


# ----------------------------------------------------------------------------
# Pallas kernel: fused per-channel affine (pre-scaled by 2**-d) + floor + clip
# ----------------------------------------------------------------------------
def _bn_quant_kernel(x_ref, k_ref, l_ref, o_ref, *, lower, upper):
    # x_ref : (br, W) float32 tile (rows folded into lanes, W multiple of 128)
    # k_ref : (1, W)  float32  (k * 2**-d, tiled across lanes per channel)
    # l_ref : (1, W)  float32  (l * 2**-d, tiled across lanes per channel)
    # The (1, W) operands are resident; the sublane broadcast is hoisted by the
    # compiler and VPU/XLU have slack at the HBM roofline, so this stays cheap.
    y = jnp.floor(x_ref[...] * k_ref[...] + l_ref[...])
    o_ref[...] = jnp.clip(y, lower, upper).astype(o_ref.dtype)


def _affine_floor_clip_jnp(x2d, k_row, l_row, lower, upper, out_dtype):
    # Tiny epilogue / fallback (pure jnp) for the < lane_width tail.
    y = jnp.floor(x2d * k_row + l_row)
    return jnp.clip(y, lower, upper).astype(out_dtype)


def pulpnn_1d_batchnorm(x, k, l, d, *, bit_o=8, sgn_o=False, out_dtype=None,
                        max_block_bytes=4 * 1024 * 1024):
    """Fused per-channel affine + floor(>> d) + clip.

    x: (N, L, C) float32 channel-last.  k, l: (1, C) float32.  d: python int >= 0.
    """
    N, L, C = x.shape
    E = N * L * C
    d = int(d)
    assert d >= 0, "d must be a non-negative integer shift"

    x = x.astype(jnp.float32)

    # Fold the exact power-of-two shift into k and l (bit-exact for this
    # module's integer-valued fp32 accumulator range).
    inv = float(2.0 ** (-d))
    k_row = k.reshape(1, C).astype(jnp.float32) * inv
    l_row = l.reshape(1, C).astype(jnp.float32) * inv

    if sgn_o:
        lower, upper = float(-(2 ** (bit_o - 1))), float(2 ** (bit_o - 1) - 1)
    else:
        lower, upper = 0.0, float(2 ** bit_o - 1)

    # Output dtype: 8-bit by default (4x less writeback on a mem-bound kernel).
    if out_dtype is None:
        if bit_o <= 8:
            out_dtype = jnp.int8 if sgn_o else jnp.uint8
        elif bit_o <= 16:
            out_dtype = jnp.int16 if sgn_o else jnp.uint16
        else:
            out_dtype = jnp.float32
    out_dtype = jnp.dtype(out_dtype)
    if jnp.issubdtype(out_dtype, jnp.integer):
        info = jnp.iinfo(out_dtype)
        if lower < info.min or upper > info.max:
            raise ValueError(
                f"out_dtype={out_dtype} cannot hold clip range [{lower}, {upper}] "
                f"(use uint8 for unsigned 8-bit outputs).")
    out_itemsize = out_dtype.itemsize

    # ---- lane-dense layout: fold rows into the 128-lane dimension ----------
    lane_base = 128 * C // math.gcd(128, C)            # lcm(128, C)
    lane_width = lane_base
    # Grow lane_width only along divisors of E (no padding copies); keep at
    # least 8 rows when possible and cap the row length at 4096 lanes.
    while (lane_width < 4096 and E % (2 * lane_width) == 0
           and E // (2 * lane_width) >= 8):
        lane_width *= 2

    flat = x.reshape(E)                                 # free (contiguous)
    rows = E // lane_width
    main = rows * lane_width                            # bulk handled by Pallas
    tail = E - main                                     # < lane_width, jnp epilogue

    out_main = None
    if rows > 0:
        x2 = (flat[:main] if tail else flat).reshape(rows, lane_width)

        reps = lane_width // C
        k_t = jnp.tile(k_row, (1, reps))                # (1, lane_width)
        l_t = jnp.tile(l_row, (1, reps))

        # Block sizing: honor the output dtype's sublane packing and keep the
        # double-buffered in+out footprint within a budget that is safe on all
        # of v5e / v6e / v7x.
        sub = {1: 32, 2: 16}.get(out_itemsize, 8)
        row_in_b = lane_width * 4
        row_out_b = lane_width * out_itemsize
        vmem_budget = 24 * 1024 * 1024
        br_cap = max(1, min(max_block_bytes // row_in_b,
                            vmem_budget // (2 * (row_in_b + row_out_b))))
        if rows <= sub:
            br = rows                                   # single full-array block
        else:
            br = min(br_cap, rows)
            if rows >= 2 * sub:
                # >= 2 grid steps so v7x's two TensorCores both get work.
                half = -(-rows // 2)                    # ceil(rows / 2)
                half = -(-half // sub) * sub            # round up to sublane mult
                br = min(br, half)
            br = max(sub, (br // sub) * sub)
        grid = (pl.cdiv(rows, br),)

        # Explicit VMEM limit: double-buffered x + out blocks plus the tiny k/l.
        fp = 2 * br * (row_in_b + row_out_b) + 4 * lane_width * 4
        vmem_limit = int(min(30 << 20, max(fp + (2 << 20), 16 << 20)))

        kernel = functools.partial(_bn_quant_kernel, lower=lower, upper=upper)
        cost = pl.CostEstimate(
            flops=3 * main,
            transcendentals=0,
            bytes_accessed=main * (4 + out_itemsize) + 2 * lane_width * 4)

        out_main = pl.pallas_call(
            kernel,
            out_shape=jax.ShapeDtypeStruct((rows, lane_width), out_dtype),
            grid=grid,
            in_specs=[
                pl.BlockSpec((br, lane_width), lambda i: (i, 0)),
                pl.BlockSpec((1, lane_width), lambda i: (0, 0)),
                pl.BlockSpec((1, lane_width), lambda i: (0, 0)),
            ],
            out_specs=pl.BlockSpec((br, lane_width), lambda i: (i, 0)),
            compiler_params=pltpu.CompilerParams(
                dimension_semantics=("parallel",),
                vmem_limit_bytes=vmem_limit),
            cost_estimate=cost,
        )(x2, k_t, l_t)

    if tail == 0:
        return out_main.reshape(N, L, C)

    # Rare path: E not divisible by lcm(128, C).  The tail starts at a channel
    # boundary (main % C == 0) and is produced exactly once by this epilogue.
    x_tail = flat[main:].reshape(-1, C)
    out_tail = _affine_floor_clip_jnp(x_tail, k_row, l_row, lower, upper, out_dtype)
    if out_main is None:
        return out_tail.reshape(N, L, C)
    out_flat = jnp.concatenate([out_main.reshape(-1), out_tail.reshape(-1)])
    return out_flat.reshape(N, L, C)


# ----------------------------------------------------------------------------
# Deterministic parameter init (mirrors PULPNN1DBatchNorm.__init__ shapes)
# ----------------------------------------------------------------------------
def init_params(key, Cin=8, BitA=8, BitW=8, BitO=8, groups=1):
    k_key, l_key = jax.random.split(key)
    k = jnp.round(
        jax.random.uniform(k_key, (1, Cin), jnp.float32,
                           minval=-(2.0 ** 8), maxval=2.0 ** 8))
    th = int(2 ** (BitA + BitW + np.log2(int(Cin / groups)) + 4 - 2 - 1))
    if th > 2 ** 30:
        th = 2 ** 30
    l = jax.random.randint(l_key, (1, Cin), -th, th, jnp.int32).astype(jnp.float32)
    d = int(BitA + BitW + np.log2(int(Cin / groups)) + 3 - BitO)
    return k, l, d


def reference(x, k, l, d, bit_o=8, sgn_o=False):
    y = x * k + l
    y = jnp.floor(y / (2.0 ** d))
    if sgn_o:
        upper, lower = 2 ** (bit_o - 1) - 1, -(2 ** (bit_o - 1))
    else:
        upper, lower = 2 ** bit_o - 1, 0
    return jnp.clip(y, float(lower), float(upper))


if __name__ == "__main__":
    Cin, BitA, BitW, BitO, groups = 8, 8, 8, 8, 1
    SgnO = False

    key = jax.random.PRNGKey(0)
    pk, xk = jax.random.split(key)
    k, l, d = init_params(pk, Cin, BitA, BitW, BitO, groups)

    # Synthetic conv-accumulator-like input: (batch=2, length=16, Cin=8),
    # channel-last, integer-valued float32.
    x = jax.random.randint(xk, (2, 16, Cin), -4096, 4096, jnp.int32).astype(jnp.float32)

    # Default out_dtype -> uint8 (SgnO=False, BitO=8): 1 B/elem writeback.
    out = pulpnn_1d_batchnorm(x, k, l, d, bit_o=BitO, sgn_o=SgnO)
    out = jax.block_until_ready(out)

    ref = reference(x, k, l, d, BitO, SgnO)
    np.testing.assert_array_equal(np.asarray(out).astype(np.float32),
                                  np.asarray(ref))

    print("KERNEL_OK")
</pallas_src>

<mosaic_0001>
module attributes {stable_mosaic.version = 11 : i64} {
  func.func @_bn_quant_kernel(%arg0: i32, %arg1: memref<2x128xf32, #tpu.memory_space<vmem>>, %arg2: memref<1x128xf32, #tpu.memory_space<vmem>>, %arg3: memref<1x128xf32, #tpu.memory_space<vmem>>, %arg4: memref<2x128xi8, #tpu.memory_space<vmem>>) attributes {dimension_semantics = [#tpu.dimension_semantics<parallel>], iteration_bounds = array<i64: 1>, scalar_prefetch = 0 : i64, scratch_operands = 0 : i64, tpu.core_type = #tpu.core_type<tc>, window_params = [{transform_indices = @transform_0, window_bounds = array<i64: 2, 128>}, {pipeline_mode = #tpu.pipeline_mode<synchronous>, transform_indices = @transform_1, window_bounds = array<i64: 1, 128>}, {pipeline_mode = #tpu.pipeline_mode<synchronous>, transform_indices = @transform_2, window_bounds = array<i64: 1, 128>}, {transform_indices = @transform_3, window_bounds = array<i64: 2, 128>}]} {
    %c0 = arith.constant 0 : index
    %c0_0 = arith.constant 0 : index
    %0 = vector.load %arg1[%c0, %c0_0] : memref<2x128xf32, #tpu.memory_space<vmem>>, vector<2x128xf32>
    %c0_1 = arith.constant 0 : index
    %c0_2 = arith.constant 0 : index
    %1 = vector.load %arg2[%c0_1, %c0_2] : memref<1x128xf32, #tpu.memory_space<vmem>>, vector<1x128xf32>
    %2 = vector.broadcast %1 : vector<1x128xf32> to vector<2x128xf32>
    %3 = arith.mulf %0, %2 : vector<2x128xf32>
    %c0_3 = arith.constant 0 : index
    %c0_4 = arith.constant 0 : index
    %4 = vector.load %arg3[%c0_3, %c0_4] : memref<1x128xf32, #tpu.memory_space<vmem>>, vector<1x128xf32>
    %5 = vector.broadcast %4 : vector<1x128xf32> to vector<2x128xf32>
    %6 = arith.addf %3, %5 : vector<2x128xf32>
    %7 = math.floor %6 : vector<2x128xf32>
    %cst = arith.constant 0.000000e+00 : f32
    %cst_5 = arith.constant 2.550000e+02 : f32
    %8 = vector.broadcast %cst : f32 to vector<2x128xf32>
    %9 = arith.maximumf %8, %7 : vector<2x128xf32>
    %10 = vector.broadcast %cst_5 : f32 to vector<2x128xf32>
    %11 = arith.minimumf %10, %9 : vector<2x128xf32>
    %12 = arith.fptoui %11 : vector<2x128xf32> to vector<2x128xi8>
    %c0_6 = arith.constant 0 : index
    %c0_7 = arith.constant 0 : index
    %13 = vector.load %arg4[%c0_6, %c0_7] : memref<2x128xi8, #tpu.memory_space<vmem>>, vector<2x128xi8>
    tpu.vector_store %arg4[%c0_6, %c0_7], %12 {strides = array<i32>} : memref<2x128xi8, #tpu.memory_space<vmem>>, vector<2x128xi8>,
    return
  }
  func.func @transform_0(%arg0: i32) -> (i32, i32) {
    %c0_i32 = arith.constant 0 : i32
    %c0_i32_0 = arith.constant 0 : i32
    return %arg0, %c0_i32 : i32, i32
  }
  func.func @transform_1(%arg0: i32) -> (i32, i32) {
    %c0_i32 = arith.constant 0 : i32
    %c0_i32_0 = arith.constant 0 : i32
    %c0_i32_1 = arith.constant 0 : i32
    return %c0_i32, %c0_i32_0 : i32, i32
  }
  func.func @transform_2(%arg0: i32) -> (i32, i32) {
    %c0_i32 = arith.constant 0 : i32
    %c0_i32_0 = arith.constant 0 : i32
    %c0_i32_1 = arith.constant 0 : i32
    return %c0_i32, %c0_i32_0 : i32, i32
  }
  func.func @transform_3(%arg0: i32) -> (i32, i32) {
    %c0_i32 = arith.constant 0 : i32
    %c0_i32_0 = arith.constant 0 : i32
    return %arg0, %c0_i32 : i32, i32
  }
}

</mosaic_0001>

<llo_original>
// kernel: tpu_custom_call.1
$region0: #{tpu_custom_call.1}
  #allocation0 [shape = 'u32[]', space=smem, size = 0x4, offset = 0x4, fixed_abs, tag = 'smem constant byte address 0x4 - core index']
  #allocation1 [shape = 'u32[144,128]{1,0:T(1,128)}', space=vmem, size = 0x12000, scoped, tag = 'internal scratch']
  %s0 = inlined_call_operand.hbm [shape: f32[2,128], index: 0, kind: input, shape index: {}]
  %s1 = inlined_call_operand.vmem [shape: f32[1,128], index: 1, kind: input, shape index: {}]
  %s2 = inlined_call_operand.vmem [shape: f32[1,128], index: 2, kind: input, shape index: {}]
  %s3 = inlined_call_operand.hbm [shape: u8[2,128], index: 3, kind: output, shape index: {}]
  %s4 = sld [smem:[#allocation0]]
  $region26: #{tpu_custom_call.1} parent=0
    _
  %s6 = ssub.s32 1, %s4
  %s7 = scalar_select 0, %s6, %s4
  $region1: #{tpu_custom_call.1} parent=0
    #allocation2 [shape = 'u8[1024]{0}', space=vmem, size = 0x400, scoped, tag = 'input window, operand 0, single buffered']
    #allocation3 [shape = 's32[1]{0}', space=sflag, size = 0x4, scoped, tag = 'scoped memory for tpu_custom_call.1']
    #allocation4 [shape = 's32[1]{0}', space=sflag, size = 0x4, scoped, tag = 'scoped memory for tpu_custom_call.1']
    #allocation5 [shape = 'u8[512]{0}', space=vmem, size = 0x400, scoped, tag = 'output window, operand 0, single buffered']
    %8 = vsyncpa [#allocation3], 0
    %9 = vsyncpa [#allocation4], 0
    // Predicated region
    $region2: #{tpu_custom_call.1} parent=1 // pred_check
      _
    $region3: #{tpu_custom_call.1} parent=1 // pred_check_branch
      %11 = sbr.rel (0) target = $region5
    $region4: #{tpu_custom_call.1} parent=1 // pred_region
      %s13 = ssub.s32 32, 32
      %14 = vsyncadd [#allocation3], %s13
      %s16 = sshll.u32 [#allocation2], 4
      %s17 = int_to_ptr.vmem [resolvable:$true] %s16
      %19 = dma.hbm_to_vmem [thread:$0]  %s0, 32, %s17, [#allocation3]
    $region5: #{tpu_custom_call.1} parent=1 // pred_fallthru
      _
    // Predicated region
    $region6: #{tpu_custom_call.1} parent=1 // pred_check
      _
    $region7: #{tpu_custom_call.1} parent=1 // pred_check_branch
      %21 = sbr.rel (0) target = $region9
    $region8: #{tpu_custom_call.1} parent=1 // pred_region
      _
    $region9: #{tpu_custom_call.1} parent=1 // pred_fallthru
      _
    // Predicated region
    $region10: #{tpu_custom_call.1} parent=1 // pred_check
      _
    $region11: #{tpu_custom_call.1} parent=1 // pred_check_branch
      %23 = sbr.rel (0) target = $region13
    $region12: #{tpu_custom_call.1} parent=1 // pred_region
      _
    $region13: #{tpu_custom_call.1} parent=1 // pred_fallthru
      _
    // Predicated region
    $region14: #{tpu_custom_call.1} parent=1 // pred_check
      _
    $region15: #{tpu_custom_call.1} parent=1 // pred_check_branch
      %25 = sbr.rel (0) target = $region17
    $region16: #{tpu_custom_call.1} parent=1 // pred_region
      %26 = dma.done [#allocation3], 32
    $region17: #{tpu_custom_call.1} parent=1 // pred_fallthru
      _
    %v27 = vld [vmem:[#allocation2] sm:$0x3]
    %v28 = vld [vmem:[%s1] sm:$0x1]
    %v30 = vlaneseq
    %v31 = vshrl.u32 %v30, 7
    %v32 = vsub.s32 0, %v31
    %v33 = vrot.slane %v28, %v32
    %v35 = vmul.f32 %v27, %v33
    %v36 = vld [vmem:[%s2] sm:$0x1]
    %v38 = vlaneseq
    %v39 = vshrl.u32 %v38, 7
    %v40 = vsub.s32 0, %v39
    %v41 = vrot.slane %v36, %v40
    %v43 = vadd.f32 %v35, %v41
    %v44 = vfloor.f32 %v43
    %v45 = vmax.f32 %v44, 0.0
    %v46 = vmin.f32 %v45, 255.0
    %v47 = vtrunc.f32 %v46
    %v48 = vpack.c.f32.eXmY %v47, %v47, 56
    %v52 = vpack.c.b8 %v48, %v48
    %vm54 = vcmask 1040384
    %vm55 = vsmask.f32 256
    %vm56 = vmand %vm54, %vm55
    %v57 = vld [vmem:[#allocation5] sm:$0x1]
    %v58 = vsel %vm56, %v52, %v57
    %59 = vst [vmem:[#allocation5] sm:$0x1] %v58
    // Predicated region
    $region18: #{tpu_custom_call.1} parent=1 // pred_check
      _
    $region19: #{tpu_custom_call.1} parent=1 // pred_check_branch
      %61 = sbr.rel (0) target = $region21
    $region20: #{tpu_custom_call.1} parent=1 // pred_region
      %s63 = ssub.s32 16, 16
      %64 = vsyncadd [#allocation4], %s63
      %s66 = sshll.u32 [#allocation5], 4
      %s67 = int_to_ptr.vmem [resolvable:$true] %s66
      %69 = dma.vmem_to_hbm [thread:$0]  %s67, 16, %s3, [#allocation4]
    $region21: #{tpu_custom_call.1} parent=1 // pred_fallthru
      _
    // Predicated region
    $region22: #{tpu_custom_call.1} parent=1 // pred_check
      _
    $region23: #{tpu_custom_call.1} parent=1 // pred_check_branch
      %71 = sbr.rel (0) target = $region25
    $region24: #{tpu_custom_call.1} parent=1 // pred_region
      %72 = dma.done [#allocation4], 16
    $region25: #{tpu_custom_call.1} parent=1 // pred_fallthru
      _
    %73 = vsyncpa [#allocation3], 1
    %74 = vsyncpa [#allocation4], 1

</llo_original>
